<compile_context>
chip_gen: v7x
topology: tpu7x:2x2x1
jax: 0.10.0
libtpu: 0.0.40
codegen_flags: <defaults>
</compile_context>

<pallas_src>
import jax
import jax.numpy as jnp
from jax.experimental import pallas as pl
from jax.experimental.pallas import tpu as pltpu


def _round_up(x, m):
    return ((x + m - 1) // m) * m


def _normalize_kernel(scale_ref, bias_ref, x_ref, o_ref):
    # scale_ref / bias_ref: (BC, 1) f32, broadcast along the lane axis.
    # x_ref / o_ref:        (BC, TL) blocks of the flattened (C, H*W) array.
    x = x_ref[...].astype(jnp.float32)
    o_ref[...] = (x * scale_ref[...] + bias_ref[...]).astype(o_ref.dtype)


def normalize(X, meansX, stdX, meansY, stdY, switch=1):
    """Per-channel normalization.

    X:            (C, H, W) array (channel-first, like the PyTorch module)
    means*, std*: (>= C,) per-channel statistics (array or Python list)
    switch:       1 -> use (meansX, stdX); otherwise -> use (meansY, stdY)
                  (static, Python-level selection, as in the original module)
    """
    C, H, W = X.shape
    if switch == 1:
        means, std = meansX, stdX
    else:
        means, std = meansY, stdY
    means = jnp.asarray(means, jnp.float32)
    std = jnp.asarray(std, jnp.float32)
    if C > means.shape[0]:
        raise ValueError("The input channel doesn't match the stats list")

    # Fold the stats once in the wrapper: out = x * (1/std) + (-mean/std).
    inv = 1.0 / std[:C]
    scale_col = inv.reshape(C, 1)
    bias_col = (-means[:C] * inv).reshape(C, 1)

    # Flatten spatial dims -> lane-dense layout (no padding; ragged tiles are
    # masked by Pallas).
    L = H * W
    x2 = X.reshape(C, L)
    itemsize = jnp.dtype(X.dtype).itemsize

    # ---- Byte-budget tiling -------------------------------------------------
    # ~2 MiB per X block. Double-buffered input + output => ~4x block bytes of
    # VMEM, comfortably under the 16 MiB v5e scoped default (and v6e/v7x 32 MiB).
    BLOCK_BUDGET = 2 * 1024 * 1024
    sub = max(8, 32 // itemsize)  # sublane multiple: 8 (f32), 16 (bf16), 32 (i8)

    # Lane tile: multiple of 128 (or the full lane extent when L <= 128),
    # as wide as the budget allows assuming the minimal channel tile.
    if L <= 128:
        TL = L  # block dim == full array dim is always legal
    else:
        tl_budget = max(128, (BLOCK_BUDGET // (sub * itemsize)) // 128 * 128)
        TL = min((L // 128) * 128, tl_budget)

    # Channel tile: sublane-aligned (or full C when C < sublane multiple),
    # filling the remaining block budget.
    if C <= sub:
        BC = C  # block dim == full array dim is always legal
    else:
        bc_budget = max(sub, (BLOCK_BUDGET // (TL * itemsize)) // sub * sub)
        BC = min((C // sub) * sub, bc_budget)

    # v7x has 2 TensorCores per chip: make sure at least one parallel grid axis
    # has extent >= 2 when the image is big enough to split.
    if pl.cdiv(C, BC) == 1 and pl.cdiv(L, TL) == 1 and L >= 256:
        TL = _round_up(pl.cdiv(L, 2), 128)

    grid = (pl.cdiv(C, BC), pl.cdiv(L, TL))
    # -------------------------------------------------------------------------

    cost = pl.CostEstimate(
        flops=2 * C * L,
        transcendentals=0,
        bytes_accessed=2 * C * L * itemsize + 2 * C * 4,
    )

    out_flat = pl.pallas_call(
        _normalize_kernel,
        out_shape=jax.ShapeDtypeStruct((C, L), X.dtype),
        grid=grid,
        in_specs=[
            pl.BlockSpec((BC, 1), lambda i, j: (i, 0)),    # scale = 1/std
            pl.BlockSpec((BC, 1), lambda i, j: (i, 0)),    # bias  = -mean/std
            pl.BlockSpec((BC, TL), lambda i, j: (i, j)),   # X
        ],
        out_specs=pl.BlockSpec((BC, TL), lambda i, j: (i, j)),
        # X (input index 2) aliases the output: in-place semantics like the
        # PyTorch module; a true in-place update needs the caller to jit/donate.
        input_output_aliases={2: 0},
        compiler_params=pltpu.CompilerParams(
            dimension_semantics=("parallel", "parallel"),
        ),
        cost_estimate=cost,
    )(scale_col, bias_col, x2)

    return out_flat.reshape(C, H, W)


if __name__ == "__main__":
    key = jax.random.PRNGKey(0)
    C, H, W = 4, 16, 16

    k_x, k_mx, k_sx, k_my, k_sy = jax.random.split(key, 5)
    X = jax.random.normal(k_x, (C, H, W), dtype=jnp.float32) * 3.0 + 1.5

    # Deterministic per-channel statistics (module __init__ just stores lists).
    meansX = jax.random.normal(k_mx, (C,), dtype=jnp.float32)
    stdX = jax.random.uniform(k_sx, (C,), dtype=jnp.float32, minval=0.5, maxval=2.0)
    meansY = jax.random.normal(k_my, (C,), dtype=jnp.float32)
    stdY = jax.random.uniform(k_sy, (C,), dtype=jnp.float32, minval=0.5, maxval=2.0)

    # switch == 1 path
    out1 = jax.block_until_ready(normalize(X, meansX, stdX, meansY, stdY, switch=1))
    ref1 = (X - meansX[:, None, None]) / stdX[:, None, None]
    assert jnp.allclose(out1, ref1, atol=1e-5, rtol=1e-5)

    # switch != 1 path
    out2 = jax.block_until_ready(normalize(X, meansX, stdX, meansY, stdY, switch=0))
    ref2 = (X - meansY[:, None, None]) / stdY[:, None, None]
    assert jnp.allclose(out2, ref2, atol=1e-5, rtol=1e-5)

    print("KERNEL_OK")
</pallas_src>

<mosaic_0001>
module attributes {stable_mosaic.version = 11 : i64} {
  func.func @_normalize_kernel(%arg0: i32, %arg1: i32, %arg2: memref<4x1xf32, #tpu.memory_space<vmem>>, %arg3: memref<4x1xf32, #tpu.memory_space<vmem>>, %arg4: memref<4x128xf32, #tpu.memory_space<vmem>>, %arg5: memref<4x128xf32, #tpu.memory_space<vmem>>) attributes {dimension_semantics = [#tpu.dimension_semantics<parallel>, #tpu.dimension_semantics<parallel>], iteration_bounds = array<i64: 1, 2>, scalar_prefetch = 0 : i64, scratch_operands = 0 : i64, tpu.core_type = #tpu.core_type<tc>, window_params = [{transform_indices = @transform_0, window_bounds = array<i64: 4, 1>}, {transform_indices = @transform_1, window_bounds = array<i64: 4, 1>}, {transform_indices = @transform_2, window_bounds = array<i64: 4, 128>}, {transform_indices = @transform_3, window_bounds = array<i64: 4, 128>}]} {
    %c0 = arith.constant 0 : index
    %c0_0 = arith.constant 0 : index
    %0 = vector.load %arg4[%c0, %c0_0] : memref<4x128xf32, #tpu.memory_space<vmem>>, vector<4x128xf32>
    %c0_1 = arith.constant 0 : index
    %c0_2 = arith.constant 0 : index
    %1 = vector.load %arg2[%c0_1, %c0_2] : memref<4x1xf32, #tpu.memory_space<vmem>>, vector<4x1xf32>
    %2 = vector.broadcast %1 : vector<4x1xf32> to vector<4x128xf32>
    %3 = arith.mulf %0, %2 : vector<4x128xf32>
    %c0_3 = arith.constant 0 : index
    %c0_4 = arith.constant 0 : index
    %4 = vector.load %arg3[%c0_3, %c0_4] : memref<4x1xf32, #tpu.memory_space<vmem>>, vector<4x1xf32>
    %5 = vector.broadcast %4 : vector<4x1xf32> to vector<4x128xf32>
    %6 = arith.addf %3, %5 : vector<4x128xf32>
    %c0_5 = arith.constant 0 : index
    %c0_6 = arith.constant 0 : index
    %7 = vector.load %arg5[%c0_5, %c0_6] : memref<4x128xf32, #tpu.memory_space<vmem>>, vector<4x128xf32>
    tpu.vector_store %arg5[%c0_5, %c0_6], %6 {strides = array<i32>} : memref<4x128xf32, #tpu.memory_space<vmem>>, vector<4x128xf32>,
    return
  }
  func.func @transform_0(%arg0: i32, %arg1: i32) -> (i32, i32) {
    %c0_i32 = arith.constant 0 : i32
    %c0_i32_0 = arith.constant 0 : i32
    return %arg0, %c0_i32 : i32, i32
  }
  func.func @transform_1(%arg0: i32, %arg1: i32) -> (i32, i32) {
    %c0_i32 = arith.constant 0 : i32
    %c0_i32_0 = arith.constant 0 : i32
    return %arg0, %c0_i32 : i32, i32
  }
  func.func @transform_2(%arg0: i32, %arg1: i32) -> (i32, i32) {
    %c0_i32 = arith.constant 0 : i32
    return %arg0, %arg1 : i32, i32
  }
  func.func @transform_3(%arg0: i32, %arg1: i32) -> (i32, i32) {
    %c0_i32 = arith.constant 0 : i32
    return %arg0, %arg1 : i32, i32
  }
}

</mosaic_0001>

<llo_original>
// kernel: tpu_custom_call.1
$region0: #{tpu_custom_call.1}
  #allocation0 [shape = 'u32[]', space=smem, size = 0x4, offset = 0x4, fixed_abs, tag = 'smem constant byte address 0x4 - core index']
  #allocation1 [shape = 'u32[144,128]{1,0:T(1,128)}', space=vmem, size = 0x12000, scoped, tag = 'internal scratch']
  %s0 = inlined_call_operand.vmem [shape: f32[4,1], index: 0, kind: input, shape index: {}]
  %s1 = inlined_call_operand.vmem [shape: f32[4,1], index: 1, kind: input, shape index: {}]
  %s2 = inlined_call_operand.hbm [shape: f32[4,256], index: 2, kind: input, shape index: {}, may-alias: {2,3}]
  %s3 = inlined_call_operand.hbm [shape: f32[4,256], index: 3, kind: output, shape index: {}, may-alias: {2,3}]
  %s4 = sld [smem:[#allocation0]]
  $region49: #{tpu_custom_call.1} parent=0
    _
  %s6 = ssub.s32 1, %s4
  %s7 = scalar_select 0, %s6, %s4
  $region1: #{tpu_custom_call.1} parent=0
    #allocation2 [shape = 'u8[4096]{0}', space=vmem, size = 0x1000, scoped, tag = 'input window, operand 2']
    #allocation3 [shape = 's32[2]{0}', space=sflag, size = 0x8, scoped, tag = 'scoped memory for tpu_custom_call.1']
    #allocation4 [shape = 's32[2]{0}', space=sflag, size = 0x8, scoped, tag = 'scoped memory for tpu_custom_call.1']
    #allocation5 [shape = 'u8[4096]{0}', space=vmem, size = 0x1000, scoped, tag = 'output window, operand 0']
    %8 = vsyncpa [#allocation3], 0
    %s9 = scalar_lea.sflag [#allocation3], 1
    %10 = vsyncpa %s9, 0
    %11 = vsyncpa [#allocation4], 0
    %s12 = scalar_lea.sflag [#allocation4], 1
    %13 = vsyncpa %s12, 0
    loop: start=0, step=1, limit=4
    $region2: #{tpu_custom_call.1} parent=1 // loop_pre_header
      _
    $region3: #{tpu_custom_call.1} parent=1 // loop_header
      %s15 = sphi 0, %s19
      %p16 = scmp.ge.s32.totalorder %s15, 4
      %s22 = sphi 0, %s34
      %s23 = sphi 0, %s30
      %s24 = sphi 0, %s22
      %s25 = sphi 0, %s23
      %s26 = sphi 0, %s24
      %s27 = sphi 0, %s25
      %s37 = sphi 0, %s39
      %s40 = sphi 0, %s37
      %s41 = sphi 0, %s40
      %s57 = sphi 0, %s41
      %s63 = sphi 0, %s65
      %s66 = sphi 0, %s63
      %s67 = sphi 0, %s66
      %s83 = sphi 0, %s67
      %s91 = sphi 0, %s93
      %s94 = sphi 0, %s91
      %s95 = sphi 0, %s94
      %s111 = sphi 0, %s95
      %s119 = sphi 0, %s121
      %s122 = sphi 0, %s119
      %s123 = sphi 0, %s122
      %s139 = sphi 0, %s123
    $region4: #{tpu_custom_call.1} parent=1 // loop_header_branch
      %18 = sbr.rel (%p16) target = $region8
    $region5: #{tpu_custom_call.1} parent=1 // loop_body
      %s20 = ssub.s32 %s15, 1
      %s21 = ssub.s32 %s15, 2
      %s28 = sadd.s32 1, %s23
      %p29 = scmp.ge.s32.totalorder %s28, 2
      %s30 = scalar_select %p29, 0, %s28
      %s31 = sadd.s32 1, %s22
      %s32 = scalar_select %p29, %s31, %s22
      %p33 = scmp.ge.s32.totalorder %s32, 1
      %s34 = scalar_select %p33, 0, %s32
      %s35 = ssub.s32 %s22, %s34
      %p36 = scmp.eq.s32.totalorder %s35, 0
      %s38 = sadd.s32 %s37, 1
      %s39 = scalar_select %p36, %s37, %s38
      %p42 = pneg %p36
      %p43 = scmp.eq.s32.totalorder %s15, 1
      %p44 = por %p42, %p43
      %p45 = scmp.ne.s32.totalorder %s37, %s40
      %p46 = scmp.eq.s32.totalorder %s15, 0
      %p47 = por %p45, %p46
      %p48 = scmp.ne.s32.totalorder %s37, %s40
      %p49 = scmp.eq.s32.totalorder %s20, 1
      %p50 = por %p48, %p49
      %p51 = scmp.ne.s32.totalorder %s40, %s41
      %p52 = scmp.eq.s32.totalorder %s20, 0
      %p53 = por %p51, %p52
      %p54 = scmp.ne.s32.totalorder %s40, %s41
      %p55 = scmp.eq.s32.totalorder %s21, 1
      %p56 = por %p54, %p55
      %p58 = scmp.ne.s32.totalorder %s41, %s57
      %p59 = scmp.eq.s32.totalorder %s21, 0
      %p60 = por %p58, %p59
      %s61 = ssub.s32 %s22, %s34
      %p62 = scmp.eq.s32.totalorder %s61, 0
      %s64 = sadd.s32 %s63, 1
      %s65 = scalar_select %p62, %s63, %s64
      %p68 = pneg %p62
      %p69 = scmp.eq.s32.totalorder %s15, 1
      %p70 = por %p68, %p69
      %p71 = scmp.ne.s32.totalorder %s63, %s66
      %p72 = scmp.eq.s32.totalorder %s15, 0
      %p73 = por %p71, %p72
      %p74 = scmp.ne.s32.totalorder %s63, %s66
      %p75 = scmp.eq.s32.totalorder %s20, 1
      %p76 = por %p74, %p75
      %p77 = scmp.ne.s32.totalorder %s66, %s67
      %p78 = scmp.eq.s32.totalorder %s20, 0
      %p79 = por %p77, %p78
      %p80 = scmp.ne.s32.totalorder %s66, %s67
      %p81 = scmp.eq.s32.totalorder %s21, 1
      %p82 = por %p80, %p81
      %p84 = scmp.ne.s32.totalorder %s67, %s83
      %p85 = scmp.eq.s32.totalorder %s21, 0
      %p86 = por %p84, %p85
      %s87 = ssub.s32 %s22, %s34
      %s88 = ssub.s32 %s23, %s30
      %s89 = sor.u32 %s87, %s88
      %p90 = scmp.eq.s32.totalorder %s89, 0
      %s92 = sadd.s32 %s91, 1
      %s93 = scalar_select %p90, %s91, %s92
      %p96 = pneg %p90
      %p97 = scmp.eq.s32.totalorder %s15, 1
      %p98 = por %p96, %p97
      %p99 = scmp.ne.s32.totalorder %s91, %s94
      %p100 = scmp.eq.s32.totalorder %s15, 0
      %p101 = por %p99, %p100
      %p102 = scmp.ne.s32.totalorder %s91, %s94
      %p103 = scmp.eq.s32.totalorder %s20, 1
      %p104 = por %p102, %p103
      %p105 = scmp.ne.s32.totalorder %s94, %s95
      %p106 = scmp.eq.s32.totalorder %s20, 0
      %p107 = por %p105, %p106
      %p108 = scmp.ne.s32.totalorder %s94, %s95
      %p109 = scmp.eq.s32.totalorder %s21, 1
      %p110 = por %p108, %p109
      %p112 = scmp.ne.s32.totalorder %s95, %s111
      %p113 = scmp.eq.s32.totalorder %s21, 0
      %p114 = por %p112, %p113
      %s115 = ssub.s32 %s22, %s34
      %s116 = ssub.s32 %s23, %s30
      %s117 = sor.u32 %s115, %s116
      %p118 = scmp.eq.s32.totalorder %s117, 0
      %s120 = sadd.s32 %s119, 1
      %s121 = scalar_select %p118, %s119, %s120
      %p124 = pneg %p118
      %p125 = scmp.eq.s32.totalorder %s15, 1
      %p126 = por %p124, %p125
      %p127 = scmp.ne.s32.totalorder %s119, %s122
      %p128 = scmp.eq.s32.totalorder %s15, 0
      %p129 = por %p127, %p128
      %p130 = scmp.ne.s32.totalorder %s119, %s122
      %p131 = scmp.eq.s32.totalorder %s20, 1
      %p132 = por %p130, %p131
      %p133 = scmp.ne.s32.totalorder %s122, %s123
      %p134 = scmp.eq.s32.totalorder %s20, 0
      %p135 = por %p133, %p134
      %p136 = scmp.ne.s32.totalorder %s122, %s123
      %p137 = scmp.eq.s32.totalorder %s21, 1
      %p138 = por %p136, %p137
      %p140 = scmp.ne.s32.totalorder %s123, %s139
      %p141 = scmp.eq.s32.totalorder %s21, 0
      %p142 = por %p140, %p141
      %p143 = scmp.le.s32.totalorder 1, %s15
      %p144 = scmp.lt.s32.totalorder %s15, 3
      %p145 = pnand %p143, %p144
      %p146 = pneg %p145
      // Predicated region
      $region9: #{tpu_custom_call.1} parent=5 // pred_check
        _
      $region10: #{tpu_custom_call.1} parent=5 // pred_check_branch
        %148 = sbr.rel (%p145) target = $region12
      $region11: #{tpu_custom_call.1} parent=5 // pred_region
        %s149 = ssub.s32 %s15, 1
        // Predicated region
        $region13: #{tpu_custom_call.1} parent=11 // pred_check
          %p150 = pneg %p53
        $region14: #{tpu_custom_call.1} parent=11 // pred_check_branch
          %152 = sbr.rel (%p150) target = $region16
        $region15: #{tpu_custom_call.1} parent=11 // pred_region
          %p153 = scmp.lt.s32.totalorder %s24, 0
          %s154 = scalar_select %p153, %s24, 0
          %s155 = smul.addr %s154, 4
          %s156 = scalar_lea.vmem %s0, %s155
        $region16: #{tpu_custom_call.1} parent=11 // pred_fallthru
          _
        // Predicated region
        $region17: #{tpu_custom_call.1} parent=11 // pred_check
          %p157 = pneg %p79
        $region18: #{tpu_custom_call.1} parent=11 // pred_check_branch
          %159 = sbr.rel (%p157) target = $region20
        $region19: #{tpu_custom_call.1} parent=11 // pred_region
          %p160 = scmp.lt.s32.totalorder %s24, 0
          %s161 = scalar_select %p160, %s24, 0
          %s162 = smul.addr %s161, 4
          %s163 = scalar_lea.vmem %s1, %s162
        $region20: #{tpu_custom_call.1} parent=11 // pred_fallthru
          _
      $region12: #{tpu_custom_call.1} parent=5 // pred_fallthru
        _
      %p164 = scmp.lt.s32.totalorder %s15, 2
      // Predicated region
      $region21: #{tpu_custom_call.1} parent=5 // pred_check
        %p165 = pneg %p164
      $region22: #{tpu_custom_call.1} parent=5 // pred_check_branch
        %167 = sbr.rel (%p165) target = $region24
      $region23: #{tpu_custom_call.1} parent=5 // pred_region
        // Predicated region
        $region25: #{tpu_custom_call.1} parent=23 // pred_check
          %p168 = pneg %p101
        $region26: #{tpu_custom_call.1} parent=23 // pred_check_branch
          %170 = sbr.rel (%p168) target = $region28
        $region27: #{tpu_custom_call.1} parent=23 // pred_region
          %s171 = sand.u32 %s91, 1
          %s172 = scalar_lea.sflag [#allocation3], %s171
          %s173 = sand.u32 %s91, 1
          %s174 = smul.addr %s173, 4
          %s175 = scalar_lea.vmem [#allocation2], %s174
          %s177 = ssub.s32 64, 64
          %178 = vsyncadd %s172, %s177
          %s179 = smul.addr %s22, 2
          %s180 = sadd.s32 %s23, %s179
          %s181 = smul.addr %s180, 64
          %s182 = scalar_lea.hbm %s2, %s181
          %s184 = sshll.u32 %s175, 4
          %s185 = int_to_ptr.vmem [resolvable:$true] %s184
          %187 = dma.hbm_to_vmem [thread:$0]  %s182, 64, %s185, %s172
        $region28: #{tpu_custom_call.1} parent=23 // pred_fallthru
          _
      $region24: #{tpu_custom_call.1} parent=5 // pred_fallthru
        _
      %p188 = scmp.le.s32.totalorder 1, %s15
      %p189 = scmp.lt.s32.totalorder %s15, 3
      %p190 = pnand %p188, %p189
      %p191 = pneg %p190
      // Predicated region
      $region29: #{tpu_custom_call.1} parent=5 // pred_check
        _
      $region30: #{tpu_custom_call.1} parent=5 // pred_check_branch
        %193 = sbr.rel (%p190) target = $region32
      $region31: #{tpu_custom_call.1} parent=5 // pred_region
        %s194 = ssub.s32 %s15, 1
        %s195 = sand.u32 %s94, 1
        %s196 = scalar_lea.sflag [#allocation3], %s195
        %s197 = sand.u32 %s94, 1
        %s198 = smul.addr %s197, 4
        %s199 = scalar_lea.vmem [#allocation2], %s198
        // Predicated region
        $region33: #{tpu_custom_call.1} parent=31 // pred_check
          %p200 = pneg %p107
        $region34: #{tpu_custom_call.1} parent=31 // pred_check_branch
          %202 = sbr.rel (%p200) target = $region36
        $region35: #{tpu_custom_call.1} parent=31 // pred_region
          %203 = dma.done %s196, 64
        $region36: #{tpu_custom_call.1} parent=31 // pred_fallthru
          _
        %p204 = scmp.lt.s32.totalorder %s24, 0
        %s205 = scalar_select %p204, %s24, 0
        %s206 = smul.addr %s205, 4
        %s207 = scalar_lea.vmem %s0, %s206
        %p208 = pneg %p53
        %p209 = pneg %p50
        %p210 = scmp.lt.s32.totalorder %s24, 0
        %s211 = scalar_select %p210, %s24, 0
        %s212 = smul.addr %s211, 4
        %s213 = scalar_lea.vmem %s1, %s212
        %p214 = pneg %p79
        %p215 = pneg %p76
        %s216 = sand.u32 %s94, 1
        %s217 = scalar_lea.sflag [#allocation3], %s216
        %s218 = sand.u32 %s94, 1
        %s219 = smul.addr %s218, 4
        %s220 = scalar_lea.vmem [#allocation2], %s219
        %p221 = pneg %p107
        %p222 = pneg %p104
        %p223 = pneg %p135
        %p224 = pneg %p132
        %s225 = sand.u32 %s122, 1
        %s226 = scalar_lea.sflag [#allocation4], %s225
        %s227 = sand.u32 %s122, 1
        %s228 = smul.addr %s227, 4
        %s229 = scalar_lea.vmem [#allocation5], %s228
        %p230 = scmp.lt.s32.totalorder %s24, 0
        %s231 = scalar_select %p230, %s24, 0
        %s232 = smul.addr %s231, 4
        %s233 = scalar_lea.vmem %s0, %s232
        %p234 = scmp.lt.s32.totalorder %s24, 0
        %s235 = scalar_select %p234, %s24, 0
        %s236 = smul.addr %s235, 4
        %s237 = scalar_lea.vmem %s1, %s236
        %v238 = vld [vmem:[%s199] sm:$0xf]
        %v239 = vld [vmem:[%s233] sm:$0xf]
        %241 = vset.pattern.permute.xlu0 0
        %242 = vperm.xlu0 %241, %v239
        %v243 = vpop.permute.xlu0 %242
        %v245 = vmul.f32 %v238, %v243
        %v246 = vld [vmem:[%s237] sm:$0xf]
        %248 = vset.pattern.permute.xlu0 0
        %249 = vperm.xlu0 %248, %v246
        %v250 = vpop.permute.xlu0 %249
        %v252 = vadd.f32 %v245, %v250
        %253 = vst [vmem:[%s229] sm:$0xf] %v252
        %s254 = sand.u32 %s122, 1
        %s255 = scalar_lea.sflag [#allocation4], %s254
        %s256 = sand.u32 %s122, 1
        %s257 = smul.addr %s256, 4
        %s258 = scalar_lea.vmem [#allocation5], %s257
        // Predicated region
        $region37: #{tpu_custom_call.1} parent=31 // pred_check
          %p259 = pneg %p132
        $region38: #{tpu_custom_call.1} parent=31 // pred_check_branch
          %261 = sbr.rel (%p259) target = $region40
        $region39: #{tpu_custom_call.1} parent=31 // pred_region
          %s263 = ssub.s32 64, 64
          %264 = vsyncadd %s255, %s263
          %s265 = smul.addr %s24, 2
          %s266 = sadd.s32 %s25, %s265
          %s267 = smul.addr %s266, 64
          %s268 = scalar_lea.hbm %s3, %s267
          %s270 = sshll.u32 %s258, 4
          %s271 = int_to_ptr.vmem [resolvable:$true] %s270
          %273 = dma.vmem_to_hbm [thread:$0]  %s271, 64, %s268, %s255
        $region40: #{tpu_custom_call.1} parent=31 // pred_fallthru
          _
      $region32: #{tpu_custom_call.1} parent=5 // pred_fallthru
        _
      %p274 = scmp.le.s32.totalorder 2, %s15
      // Predicated region
      $region41: #{tpu_custom_call.1} parent=5 // pred_check
        %p275 = pneg %p274
      $region42: #{tpu_custom_call.1} parent=5 // pred_check_branch
        %277 = sbr.rel (%p275) target = $region44
      $region43: #{tpu_custom_call.1} parent=5 // pred_region
        %s278 = ssub.s32 %s15, 2
        // Predicated region
        $region45: #{tpu_custom_call.1} parent=43 // pred_check
          %p279 = pneg %p138
        $region46: #{tpu_custom_call.1} parent=43 // pred_check_branch
          %281 = sbr.rel (%p279) target = $region48
        $region47: #{tpu_custom_call.1} parent=43 // pred_region
          %s282 = sand.u32 %s123, 1
          %s283 = scalar_lea.sflag [#allocation4], %s282
          %s284 = sand.u32 %s123, 1
          %s285 = smul.addr %s284, 4
          %s286 = scalar_lea.vmem [#allocation5], %s285
          %287 = dma.done %s283, 64
        $region48: #{tpu_custom_call.1} parent=43 // pred_fallthru
          _
      $region44: #{tpu_custom_call.1} parent=5 // pred_fallthru
        _
    $region6: #{tpu_custom_call.1} parent=1 // loop_footer
      %s19 = sadd.s32 1, %s15
    $region7: #{tpu_custom_call.1} parent=1 // loop_footer_branch
      %14 = sbr.rel target = $region3
    $region8: #{tpu_custom_call.1} parent=1 // loop_exit
      _
    %288 = vsyncpa [#allocation3], 1
    %s289 = scalar_lea.sflag [#allocation3], 1
    %290 = vsyncpa %s289, 1
    %291 = vsyncpa [#allocation4], 1
    %s292 = scalar_lea.sflag [#allocation4], 1
    %293 = vsyncpa %s292, 1

</llo_original>
